<compile_context>
chip_gen: v7x
topology: tpu7x:2x2x1
jax: 0.10.0
libtpu: 0.0.40
codegen_flags: <defaults>
</compile_context>

<pallas_src>
import math

import jax
import jax.numpy as jnp
from jax.experimental import pallas as pl
from jax.experimental.pallas import tpu as pltpu


# -----------------------------------------------------------------------------
# Kernel (lane-dense / transposed layout: everything is (features, batch_tile))
# -----------------------------------------------------------------------------
def make_phi_kernel(num_linear_layers: int, z_dim: int):
    """Fused MLP + L2-normalize kernel.

    Kernel signature:
        kernel(goal_t_ref, action_t_ref,
               w0_goal_T_ref, w0_action_T_ref, b0_ref,
               w1_T_ref, b1_ref, ..., wL_T_ref, bL_ref,
               out_ref)
    All weight refs are pre-transposed (fan_out, fan_in); biases are (fan_out, 1).
    Intermediates are (fan_out, tb) with batch on the lane axis.
    """
    sqrt_zdim = math.sqrt(float(z_dim))

    def kernel(goal_ref, action_ref, *refs):
        out_ref = refs[-1]
        wb = refs[:-1]

        # Layer 0: fused concat as a split matmul (two MXU pushes), f32 accumulate.
        # Result is lane-dense (hidden, tb); bias (hidden, 1) broadcasts over lanes.
        h = (
            jnp.dot(wb[0][...], goal_ref[...], preferred_element_type=jnp.float32)
            + jnp.dot(wb[1][...], action_ref[...], preferred_element_type=jnp.float32)
            + wb[2][...]
        )
        if num_linear_layers > 1:
            h = jnp.maximum(h, 0.0)

        # Remaining layers (Python-unrolled; trip count is tiny and static).
        for l in range(1, num_linear_layers):
            w_t = wb[3 + 2 * (l - 1)][...]
            b_t = wb[4 + 2 * (l - 1)][...]          # (fan_out, 1), broadcasts over lanes
            h = jnp.dot(w_t, h, preferred_element_type=jnp.float32) + b_t
            if l < num_linear_layers - 1:
                h = jnp.maximum(h, 0.0)             # ReLU on hidden layers only

        # torch F.normalize(dim=1, eps=1e-12) then * sqrt(z_dim), as rsqrt-multiply:
        # 1/max(||h||, 1e-12) == rsqrt(max(sum(h^2), 1e-24)).  Features are axis 0.
        sumsq = jnp.sum(h * h, axis=0, keepdims=True)        # (1, tb)
        inv = jax.lax.rsqrt(jnp.maximum(sumsq, 1e-24))
        out_ref[...] = (h * (sqrt_zdim * inv)).astype(out_ref.dtype)

    return kernel


# -----------------------------------------------------------------------------
# Parameter construction (deterministic, PyTorch-Linear-style uniform init)
# -----------------------------------------------------------------------------
def init_mlp_params(key, raw_input_dim, hidden_dim, z_dim, num_encoder_layers):
    """num_encoder_layers hidden Linear+ReLU layers, then a final Linear to z_dim."""
    dims = [raw_input_dim] + [hidden_dim] * num_encoder_layers + [z_dim]
    params = []
    for fan_in, fan_out in zip(dims[:-1], dims[1:]):
        key, kw, kb = jax.random.split(key, 3)
        bound = 1.0 / math.sqrt(fan_in)
        w = jax.random.uniform(kw, (fan_in, fan_out), jnp.float32, -bound, bound)
        b = jax.random.uniform(kb, (1, fan_out), jnp.float32, -bound, bound)
        params.append((w, b))
    return params


# -----------------------------------------------------------------------------
# Wrapper
# -----------------------------------------------------------------------------
def _pick_batch_tile(batch, requested):
    """Lane-aligned (multiple of 128) tile; auto mode targets >= 2 grid blocks
    (keeps both v7x TensorCores busy) and large tiles (amortize grid-step cost)."""
    if requested is None:
        tb = pl.cdiv(batch, 2)
    else:
        tb = requested
    tb = (tb // 128) * 128
    tb = max(128, min(tb, 8192, (batch // 128) * 128))   # never exceed the batch
    return int(tb)


def recurrent_phi_forward(goal, action, params, z_dim, *, batch_tile=None,
                          single_block_max=256):
    """Pallas implementation of RecurrentPhi.forward (memory_type='mlp').

    goal: [B, goal_dim], action: [B, action_dim]  ->  z: [B, z_dim]

    Small batches run as a single no-grid invocation with everything resident
    in VMEM.  Larger batches are tiled over the batch (lane) axis with a
    "parallel" grid axis; weights use constant index maps so they are DMA'd
    once and stay VMEM-resident.  No input padding / output slicing: the
    ragged last block is masked by Pallas on the store.
    """
    batch, goal_dim = goal.shape
    action_dim = action.shape[1]
    out_dtype = goal.dtype          # native dtype I/O (bf16 callers stay bf16)

    # Lane-dense layout: batch on the lane axis.  Production callers that
    # already hold (feat, B) / consume (z_dim, B) can skip these transposes.
    goal_t = goal.T                 # (goal_dim, B)
    action_t = action.T             # (action_dim, B)

    # Pre-transpose the weights once.  W0 is split at goal_dim so the
    # torch.concat([goal, action], dim=-1) is fused with no in-kernel slicing
    # (concat order [goal | action] matches the module's forward exactly).
    w0, b0 = params[0]
    flat_params = [w0[:goal_dim, :].T, w0[goal_dim:, :].T, b0.reshape(-1, 1)]
    for w, b in params[1:]:
        flat_params += [w.T, b.reshape(-1, 1)]

    num_linear_layers = len(params)
    kernel = make_phi_kernel(num_linear_layers, z_dim)

    if batch <= single_block_max or batch < 128:
        # Overhead-minimal path: no grid, full-array VMEM refs.
        vmem = pltpu.MemorySpace.VMEM
        in_specs = [pl.BlockSpec(memory_space=vmem)] * (2 + len(flat_params))
        out_t = pl.pallas_call(
            kernel,
            out_shape=jax.ShapeDtypeStruct((z_dim, batch), out_dtype),
            in_specs=in_specs,
            out_specs=pl.BlockSpec(memory_space=vmem),
        )(goal_t, action_t, *flat_params)
        return out_t.T

    # Production path: batch-tiled along the lane axis, parallel grid axis
    # (megacore / v7x 2 TCs).  No padding: pl.cdiv grid, Pallas drops OOB
    # writes of the ragged last block and garbage tail columns are per-column
    # independent, so they cannot contaminate valid columns.
    tb = _pick_batch_tile(batch, batch_tile)
    grid = (pl.cdiv(batch, tb),)

    in_specs = [
        pl.BlockSpec((goal_dim, tb), lambda i: (0, i)),
        pl.BlockSpec((action_dim, tb), lambda i: (0, i)),
    ] + [pl.BlockSpec(p.shape, lambda i: (0, 0)) for p in flat_params]
    out_spec = pl.BlockSpec((z_dim, tb), lambda i: (0, i))

    out_t = pl.pallas_call(
        kernel,
        out_shape=jax.ShapeDtypeStruct((z_dim, batch), out_dtype),
        grid=grid,
        in_specs=in_specs,
        out_specs=out_spec,
        compiler_params=pltpu.CompilerParams(dimension_semantics=("parallel",)),
    )(goal_t, action_t, *flat_params)
    return out_t.T


# -----------------------------------------------------------------------------
# Pure-JAX reference for sanity checking
# -----------------------------------------------------------------------------
def recurrent_phi_reference(goal, action, params, z_dim):
    h = jnp.concatenate([goal, action], axis=-1).astype(jnp.float32)
    for l, (w, b) in enumerate(params):
        h = h @ w + b
        if l < len(params) - 1:
            h = jnp.maximum(h, 0.0)
    norm = jnp.maximum(jnp.sqrt(jnp.sum(h * h, axis=1, keepdims=True)), 1e-12)
    return math.sqrt(float(z_dim)) * h / norm


if __name__ == "__main__":
    # Module hyperparameters (small, consistent with the forward contract).
    goal_dimension = 12
    action_length = 4
    z_dimension = 16
    hidden_dimension = 32
    history_length = 1          # memory_type='mlp' with flattened history of 1
    num_encoder_layers = 2
    batch = 8

    raw_input_dimension = (goal_dimension + action_length) * history_length

    key = jax.random.PRNGKey(0)
    k_params, k_goal, k_action, k_goal2, k_action2 = jax.random.split(key, 5)

    params = init_mlp_params(
        k_params, raw_input_dimension, hidden_dimension, z_dimension, num_encoder_layers
    )

    # --- small-batch (no-grid) path ------------------------------------------
    goal = jax.random.normal(k_goal, (batch, goal_dimension), jnp.float32)
    action = jax.random.normal(k_action, (batch, action_length), jnp.float32)

    z = jax.block_until_ready(recurrent_phi_forward(goal, action, params, z_dimension))
    z_ref = recurrent_phi_reference(goal, action, params, z_dimension)

    assert z.shape == (batch, z_dimension)
    assert jnp.allclose(z, z_ref, atol=1e-4, rtol=1e-4), "mismatch vs reference (small path)"
    assert jnp.allclose(
        jnp.linalg.norm(z, axis=1), jnp.full((batch,), math.sqrt(z_dimension)), atol=1e-3
    )

    # --- batch-tiled (parallel grid) path with a ragged last block ------------
    # 300 rows / tile 128 -> 3 blocks; last block is partial and handled without
    # any padding or output slicing.
    big_batch = 300
    goal_b = jax.random.normal(k_goal2, (big_batch, goal_dimension), jnp.float32)
    action_b = jax.random.normal(k_action2, (big_batch, action_length), jnp.float32)

    z_b = jax.block_until_ready(
        recurrent_phi_forward(goal_b, action_b, params, z_dimension, batch_tile=128)
    )
    z_b_ref = recurrent_phi_reference(goal_b, action_b, params, z_dimension)

    assert z_b.shape == (big_batch, z_dimension)
    assert jnp.allclose(z_b, z_b_ref, atol=1e-4, rtol=1e-4), "mismatch vs reference (tiled path)"

    print("KERNEL_OK")
</pallas_src>

<mosaic_0001>
module attributes {stable_mosaic.version = 11 : i64} {
  func.func @kernel(%arg0: memref<12x8xf32, #tpu.memory_space<vmem>>, %arg1: memref<4x8xf32, #tpu.memory_space<vmem>>, %arg2: memref<32x12xf32, #tpu.memory_space<vmem>>, %arg3: memref<32x4xf32, #tpu.memory_space<vmem>>, %arg4: memref<32x1xf32, #tpu.memory_space<vmem>>, %arg5: memref<32x32xf32, #tpu.memory_space<vmem>>, %arg6: memref<32x1xf32, #tpu.memory_space<vmem>>, %arg7: memref<16x32xf32, #tpu.memory_space<vmem>>, %arg8: memref<16x1xf32, #tpu.memory_space<vmem>>, %arg9: memref<16x8xf32, #tpu.memory_space<vmem>>) attributes {dimension_semantics = [], scalar_prefetch = 0 : i64, scratch_operands = 0 : i64, tpu.core_type = #tpu.core_type<tc>} {
    %c0 = arith.constant 0 : index
    %c0_0 = arith.constant 0 : index
    %0 = vector.load %arg2[%c0, %c0_0] : memref<32x12xf32, #tpu.memory_space<vmem>>, vector<32x12xf32>
    %c0_1 = arith.constant 0 : index
    %c0_2 = arith.constant 0 : index
    %1 = vector.load %arg0[%c0_1, %c0_2] : memref<12x8xf32, #tpu.memory_space<vmem>>, vector<12x8xf32>
    %cst = arith.constant dense<0.000000e+00> : vector<32x8xf32>
    %2 = tpu.matmul %0, %1, %cst {dimension_numbers = #tpu.dot_dimension_numbers<[1], [0], [0], [1], [0, 0, 1, 1], [], []>} : vector<32x12xf32>, vector<12x8xf32>, vector<32x8xf32> -> vector<32x8xf32>
    %c0_3 = arith.constant 0 : index
    %c0_4 = arith.constant 0 : index
    %3 = vector.load %arg3[%c0_3, %c0_4] : memref<32x4xf32, #tpu.memory_space<vmem>>, vector<32x4xf32>
    %c0_5 = arith.constant 0 : index
    %c0_6 = arith.constant 0 : index
    %4 = vector.load %arg1[%c0_5, %c0_6] : memref<4x8xf32, #tpu.memory_space<vmem>>, vector<4x8xf32>
    %cst_7 = arith.constant dense<0.000000e+00> : vector<32x8xf32>
    %5 = tpu.matmul %3, %4, %cst_7 {dimension_numbers = #tpu.dot_dimension_numbers<[1], [0], [0], [1], [0, 0, 1, 1], [], []>} : vector<32x4xf32>, vector<4x8xf32>, vector<32x8xf32> -> vector<32x8xf32>
    %6 = arith.addf %2, %5 : vector<32x8xf32>
    %c0_8 = arith.constant 0 : index
    %c0_9 = arith.constant 0 : index
    %7 = vector.load %arg4[%c0_8, %c0_9] : memref<32x1xf32, #tpu.memory_space<vmem>>, vector<32x1xf32>
    %8 = vector.broadcast %7 : vector<32x1xf32> to vector<32x8xf32>
    %9 = arith.addf %6, %8 : vector<32x8xf32>
    %cst_10 = arith.constant 0.000000e+00 : f32
    %10 = vector.broadcast %cst_10 : f32 to vector<32x8xf32>
    %11 = arith.maximumf %9, %10 : vector<32x8xf32>
    %c0_11 = arith.constant 0 : index
    %c0_12 = arith.constant 0 : index
    %12 = vector.load %arg5[%c0_11, %c0_12] : memref<32x32xf32, #tpu.memory_space<vmem>>, vector<32x32xf32>
    %c0_13 = arith.constant 0 : index
    %c0_14 = arith.constant 0 : index
    %13 = vector.load %arg6[%c0_13, %c0_14] : memref<32x1xf32, #tpu.memory_space<vmem>>, vector<32x1xf32>
    %cst_15 = arith.constant dense<0.000000e+00> : vector<32x8xf32>
    %14 = tpu.matmul %12, %11, %cst_15 {dimension_numbers = #tpu.dot_dimension_numbers<[1], [0], [0], [1], [0, 0, 1, 1], [], []>} : vector<32x32xf32>, vector<32x8xf32>, vector<32x8xf32> -> vector<32x8xf32>
    %15 = vector.broadcast %13 : vector<32x1xf32> to vector<32x8xf32>
    %16 = arith.addf %14, %15 : vector<32x8xf32>
    %cst_16 = arith.constant 0.000000e+00 : f32
    %17 = vector.broadcast %cst_16 : f32 to vector<32x8xf32>
    %18 = arith.maximumf %16, %17 : vector<32x8xf32>
    %c0_17 = arith.constant 0 : index
    %c0_18 = arith.constant 0 : index
    %19 = vector.load %arg7[%c0_17, %c0_18] : memref<16x32xf32, #tpu.memory_space<vmem>>, vector<16x32xf32>
    %c0_19 = arith.constant 0 : index
    %c0_20 = arith.constant 0 : index
    %20 = vector.load %arg8[%c0_19, %c0_20] : memref<16x1xf32, #tpu.memory_space<vmem>>, vector<16x1xf32>
    %cst_21 = arith.constant dense<0.000000e+00> : vector<16x8xf32>
    %21 = tpu.matmul %19, %18, %cst_21 {dimension_numbers = #tpu.dot_dimension_numbers<[1], [0], [0], [1], [0, 0, 1, 1], [], []>} : vector<16x32xf32>, vector<32x8xf32>, vector<16x8xf32> -> vector<16x8xf32>
    %22 = vector.broadcast %20 : vector<16x1xf32> to vector<16x8xf32>
    %23 = arith.addf %21, %22 : vector<16x8xf32>
    %24 = arith.mulf %23, %23 : vector<16x8xf32>
    %cst_22 = arith.constant dense<0.000000e+00> : vector<8xf32>
    %25 = vector.multi_reduction <add>, %24, %cst_22 [0] : vector<16x8xf32> to vector<8xf32>
    %26 = vector.shape_cast %25 : vector<8xf32> to vector<1x8xf32>
    %cst_23 = arith.constant 1.000000e-24 : f32
    %27 = vector.broadcast %cst_23 : f32 to vector<1x8xf32>
    %28 = arith.maximumf %26, %27 : vector<1x8xf32>
    %29 = math.rsqrt %28 : vector<1x8xf32>
    %cst_24 = arith.constant 4.000000e+00 : f32
    %30 = vector.broadcast %cst_24 : f32 to vector<1x8xf32>
    %31 = arith.mulf %30, %29 : vector<1x8xf32>
    %32 = vector.broadcast %31 : vector<1x8xf32> to vector<16x8xf32>
    %33 = arith.mulf %23, %32 : vector<16x8xf32>
    %c0_25 = arith.constant 0 : index
    %c0_26 = arith.constant 0 : index
    %34 = vector.load %arg9[%c0_25, %c0_26] : memref<16x8xf32, #tpu.memory_space<vmem>>, vector<16x8xf32>
    tpu.vector_store %arg9[%c0_25, %c0_26], %33 {strides = array<i32>} : memref<16x8xf32, #tpu.memory_space<vmem>>, vector<16x8xf32>,
    return
  }
}

</mosaic_0001>

<llo_original>
// kernel: tpu_custom_call.1
$region0: #{tpu_custom_call.1}
  #allocation0 [shape = 'u32[]', space=smem, size = 0x4, offset = 0x4, fixed_abs, tag = 'smem constant byte address 0x4 - core index']
  #allocation1 [shape = 'u32[144,128]{1,0:T(1,128)}', space=vmem, size = 0x12000, scoped, tag = 'internal scratch']
  %s0 = inlined_call_operand.vmem [shape: f32[12,8], index: 0, kind: input, shape index: {}]
  %s1 = inlined_call_operand.vmem [shape: f32[4,8], index: 1, kind: input, shape index: {}]
  %s2 = inlined_call_operand.vmem [shape: f32[32,12], index: 2, kind: input, shape index: {}]
  %s3 = inlined_call_operand.vmem [shape: f32[32,4], index: 3, kind: input, shape index: {}]
  %s4 = inlined_call_operand.vmem [shape: f32[32,1], index: 4, kind: input, shape index: {}]
  %s5 = inlined_call_operand.vmem [shape: f32[32,32], index: 5, kind: input, shape index: {}]
  %s6 = inlined_call_operand.vmem [shape: f32[32,1], index: 6, kind: input, shape index: {}]
  %s7 = inlined_call_operand.vmem [shape: f32[16,32], index: 7, kind: input, shape index: {}]
  %s8 = inlined_call_operand.vmem [shape: f32[16,1], index: 8, kind: input, shape index: {}]
  %s9 = inlined_call_operand.vmem [shape: f32[16,8], index: 9, kind: output, shape index: {}]
  %s10 = sld [smem:[#allocation0]]
  $region46: #{tpu_custom_call.1} parent=0
    _
  %s12 = ssub.s32 1, %s10
  %s13 = scalar_select 0, %s12, %s10
  // Predicated region
  $region2: #{tpu_custom_call.1} parent=0 // pred_check
    _
  $region3: #{tpu_custom_call.1} parent=0 // pred_check_branch
    %15 = sbr.rel (0) target = $region5
  $region4: #{tpu_custom_call.1} parent=0 // pred_region
    _
  $region5: #{tpu_custom_call.1} parent=0 // pred_fallthru
    _
  // Predicated region
  $region6: #{tpu_custom_call.1} parent=0 // pred_check
    _
  $region7: #{tpu_custom_call.1} parent=0 // pred_check_branch
    %17 = sbr.rel (0) target = $region9
  $region8: #{tpu_custom_call.1} parent=0 // pred_region
    _
  $region9: #{tpu_custom_call.1} parent=0 // pred_fallthru
    _
  // Predicated region
  $region10: #{tpu_custom_call.1} parent=0 // pred_check
    _
  $region11: #{tpu_custom_call.1} parent=0 // pred_check_branch
    %19 = sbr.rel (0) target = $region13
  $region12: #{tpu_custom_call.1} parent=0 // pred_region
    _
  $region13: #{tpu_custom_call.1} parent=0 // pred_fallthru
    _
  // Predicated region
  $region14: #{tpu_custom_call.1} parent=0 // pred_check
    _
  $region15: #{tpu_custom_call.1} parent=0 // pred_check_branch
    %21 = sbr.rel (0) target = $region17
  $region16: #{tpu_custom_call.1} parent=0 // pred_region
    _
  $region17: #{tpu_custom_call.1} parent=0 // pred_fallthru
    _
  // Predicated region
  $region18: #{tpu_custom_call.1} parent=0 // pred_check
    _
  $region19: #{tpu_custom_call.1} parent=0 // pred_check_branch
    %23 = sbr.rel (0) target = $region21
  $region20: #{tpu_custom_call.1} parent=0 // pred_region
    _
  $region21: #{tpu_custom_call.1} parent=0 // pred_fallthru
    _
  // Predicated region
  $region22: #{tpu_custom_call.1} parent=0 // pred_check
    _
  $region23: #{tpu_custom_call.1} parent=0 // pred_check_branch
    %25 = sbr.rel (0) target = $region25
  $region24: #{tpu_custom_call.1} parent=0 // pred_region
    _
  $region25: #{tpu_custom_call.1} parent=0 // pred_fallthru
    _
  // Predicated region
  $region26: #{tpu_custom_call.1} parent=0 // pred_check
    _
  $region27: #{tpu_custom_call.1} parent=0 // pred_check_branch
    %27 = sbr.rel (0) target = $region29
  $region28: #{tpu_custom_call.1} parent=0 // pred_region
    _
  $region29: #{tpu_custom_call.1} parent=0 // pred_fallthru
    _
  // Predicated region
  $region30: #{tpu_custom_call.1} parent=0 // pred_check
    _
  $region31: #{tpu_custom_call.1} parent=0 // pred_check_branch
    %29 = sbr.rel (0) target = $region33
  $region32: #{tpu_custom_call.1} parent=0 // pred_region
    _
  $region33: #{tpu_custom_call.1} parent=0 // pred_fallthru
    _
  // Predicated region
  $region34: #{tpu_custom_call.1} parent=0 // pred_check
    _
  $region35: #{tpu_custom_call.1} parent=0 // pred_check_branch
    %31 = sbr.rel (0) target = $region37
  $region36: #{tpu_custom_call.1} parent=0 // pred_region
    _
  $region37: #{tpu_custom_call.1} parent=0 // pred_fallthru
    _
  %v32 = vld [vmem:[%s2] sm:$0xff]
  %v33 = vld [vmem:[%s2 + $0x8] sm:$0xff]
  %v34 = vld [vmem:[%s2 + $0x10] sm:$0xff]
  %v35 = vld [vmem:[%s2 + $0x18] sm:$0xff]
  %v36 = vld [vmem:[%s0] sm:$0xff]
  %v37 = vld [vmem:[%s0 + $0x8] sm:$0xf]
  %v38 = vld [vmem:[%s3] sm:$0xff]
  %v39 = vld [vmem:[%s3 + $0x8] sm:$0xff]
  %v40 = vld [vmem:[%s3 + $0x10] sm:$0xff]
  %v41 = vld [vmem:[%s3 + $0x18] sm:$0xff]
  %v42 = vld [vmem:[%s1] sm:$0xf]
  %vm43 = vcmask 31744
  %v45 = vsel %vm43, %v38, 0
  %v48 = vsel %vm43, %v39, 0
  %v51 = vsel %vm43, %v40, 0
  %v54 = vsel %vm43, %v41, 0
  %vm56 = vcmask 1043456
  %v58 = vsel %vm56, %v42, 0
  %60 = vmatprep.subr.mxu0 0.0
  %61 = vmatpush1.msra.mxu0 %v58
  %62 = vmatprep.subr.mxu0 0.0
  %63 = vmatpush1.msra.mxu0 0.0
  %64 = vmatprep.subr.mxu0 0.0
  %65 = vmatpush1.msra.mxu0 0.0
  %66 = vmatprep.subr.mxu0 0.0
  %67 = vmatpush1.msra.mxu0 0.0
  %68 = vmatprep.subr.mxu0 0.0
  %69 = vmatpush1.msra.mxu0 0.0
  %70 = vmatprep.subr.mxu0 0.0
  %71 = vmatpush1.msra.mxu0 0.0
  %72 = vmatprep.subr.mxu0 0.0
  %73 = vmatpush1.msra.mxu0 0.0
  %74 = vmatprep.subr.mxu0 0.0
  %75 = vmatpush1.msra.mxu0 0.0
  %76 = vmatprep.subr.mxu0 0.0
  %77 = vmatpush1.msra.mxu0 0.0
  %78 = vmatprep.subr.mxu0 0.0
  %79 = vmatpush1.msra.mxu0 0.0
  %80 = vmatprep.subr.mxu0 0.0
  %81 = vmatpush1.msra.mxu0 0.0
  %82 = vmatprep.subr.mxu0 0.0
  %83 = vmatpush1.msra.mxu0 0.0
  %84 = vmatprep.subr.mxu0 0.0
  %85 = vmatpush1.msra.mxu0 0.0
  %86 = vmatprep.subr.mxu0 0.0
  %87 = vmatpush1.msra.mxu0 0.0
  %88 = vmatprep.subr.mxu0 0.0
  %89 = vmatpush1.msra.mxu0 0.0
  %90 = vmatprep.subr.mxu0 0.0
  %91 = vmatpush1.msra.mxu0 0.0
  %92 = vmatprep.subr.mxu0 0.0
  %93 = vmatpush1.msra.mxu0 0.0
  %94 = vmatprep.subr.mxu0 0.0
  %95 = vmatpush1.msra.mxu0 0.0
  %96 = vmatprep.subr.mxu0 0.0
  %97 = vmatpush1.msra.mxu0 0.0
  %98 = vmatprep.subr.mxu0 0.0
  %99 = vmatpush1.msra.mxu0 0.0
  %100 = vmatprep.subr.mxu0 0.0
  %101 = vmatpush1.msra.mxu0 0.0
  %102 = vmatprep.subr.mxu0 0.0
  %103 = vmatpush1.msra.mxu0 0.0
  %104 = vmatprep.subr.mxu0 0.0
  %105 = vmatpush1.msra.mxu0 0.0
  %106 = vmatprep.subr.mxu0 0.0
  %107 = vmatpush1.msra.mxu0 0.0
  %108 = vmatprep.subr.mxu0 0.0
  %109 = vmatpush1.msra.mxu0 0.0
  %110 = vmatprep.subr.mxu0 0.0
  %111 = vmatpush1.msra.mxu0 0.0
  %112 = vmatprep.subr.mxu0 0.0
  %113 = vmatpush1.msra.mxu0 0.0
  %114 = vmatprep.subr.mxu0 0.0
  %115 = vmatpush1.msra.mxu0 0.0
  %116 = vmatprep.subr.mxu0 0.0
  %117 = vmatpush1.msra.mxu0 0.0
  %118 = vmatprep.subr.mxu0 0.0
  %119 = vmatpush1.msra.mxu0 0.0
  %120 = vmatprep.subr.mxu0 0.0
  %121 = vmatpush1.msra.mxu0 0.0
  %122 = vmatprep.subr.mxu0 0.0
  %123 = vmatpush1.msra.mxu0 0.0
  %124 = vmatprep.mubr.f32.mxu0 0.0
  %125 = vmatmul.mubr.f32.gmra.mrb[0].mxu0 %v45
  %v126 = vpop.f32.mrb[0].mxu0
  %v127 = vadd.f32 0.0, %v126
  %v128 = vpop.f32.mrb[0].mxu0
  %129 = vmatprep.mubr.f32.mxu0 0.0
  %130 = vmatmul.mubr.f32.gmra.mrb[0].mxu0 %v48
  %v131 = vpop.f32.mrb[0].mxu0
  %v132 = vadd.f32 0.0, %v131
  %v133 = vpop.f32.mrb[0].mxu0
  %134 = vmatprep.mubr.f32.mxu0 0.0
  %135 = vmatmul.mubr.f32.gmra.mrb[0].mxu0 %v51
  %v136 = vpop.f32.mrb[0].mxu0
  %v137 = vadd.f32 0.0, %v136
  %v138 = vpop.f32.mrb[0].mxu0
  %139 = vmatprep.mubr.f32.mxu0 0.0
  %140 = vmatmul.mubr.f32.gmra.mrb[0].mxu0 %v54
  %v141 = vpop.f32.mrb[0].mxu0
  %v142 = vadd.f32 0.0, %v141
  %v143 = vpop.f32.mrb[0].mxu0
  %144 = vdwg.mxu0
  %vm145 = vcmask 97280
  %v147 = vsel %vm145, %v32, 0
  %v150 = vsel %vm145, %v33, 0
  %v153 = vsel %vm145, %v34, 0
  %v156 = vsel %vm145, %v35, 0
  %v159 = vsel %vm56, %v37, 0
  %161 = vmatprep.subr.mxu0 0.0
  %162 = vmatpush1.msra.mxu0 %v36
  %163 = vmatprep.subr.mxu0 0.0
  %164 = vmatpush1.msra.mxu0 %v159
  %165 = vmatprep.subr.mxu0 0.0
  %166 = vmatpush1.msra.mxu0 0.0
  %167 = vmatprep.subr.mxu0 0.0
  %168 = vmatpush1.msra.mxu0 0.0
  %169 = vmatprep.subr.mxu0 0.0
  %170 = vmatpush1.msra.mxu0 0.0
  %171 = vmatprep.subr.mxu0 0.0
  %172 = vmatpush1.msra.mxu0 0.0
  %173 = vmatprep.subr.mxu0 0.0
  %174 = vmatpush1.msra.mxu0 0.0
  %175 = vmatprep.subr.mxu0 0.0
  %176 = vmatpush1.msra.mxu0 0.0
  %177 = vmatprep.subr.mxu0 0.0
  %178 = vmatpush1.msra.mxu0 0.0
  %179 = vmatprep.subr.mxu0 0.0
  %180 = vmatpush1.msra.mxu0 0.0
  %181 = vmatprep.subr.mxu0 0.0
  %182 = vmatpush1.msra.mxu0 0.0
  %183 = vmatprep.subr.mxu0 0.0
  %184 = vmatpush1.msra.mxu0 0.0
  %185 = vmatprep.subr.mxu0 0.0
  %186 = vmatpush1.msra.mxu0 0.0
  %187 = vmatprep.subr.mxu0 0.0
  %188 = vmatpush1.msra.mxu0 0.0
  %189 = vmatprep.subr.mxu0 0.0
  %190 = vmatpush1.msra.mxu0 0.0
  %191 = vmatprep.subr.mxu0 0.0
  %192 = vmatpush1.msra.mxu0 0.0
  %193 = vmatprep.subr.mxu0 0.0
  %194 = vmatpush1.msra.mxu0 0.0
  %195 = vmatprep.subr.mxu0 0.0
  %196 = vmatpush1.msra.mxu0 0.0
  %197 = vmatprep.subr.mxu0 0.0
  %198 = vmatpush1.msra.mxu0 0.0
  %199 = vmatprep.subr.mxu0 0.0
  %200 = vmatpush1.msra.mxu0 0.0
  %201 = vmatprep.subr.mxu0 0.0
  %202 = vmatpush1.msra.mxu0 0.0
  %203 = vmatprep.subr.mxu0 0.0
  %204 = vmatpush1.msra.mxu0 0.0
  %205 = vmatprep.subr.mxu0 0.0
  %206 = vmatpush1.msra.mxu0 0.0
  %207 = vmatprep.subr.mxu0 0.0
  %208 = vmatpush1.msra.mxu0 0.0
  %209 = vmatprep.subr.mxu0 0.0
  %210 = vmatpush1.msra.mxu0 0.0
  %211 = vmatprep.subr.mxu0 0.0
  %212 = vmatpush1.msra.mxu0 0.0
  %213 = vmatprep.subr.mxu0 0.0
  %214 = vmatpush1.msra.mxu0 0.0
  %215 = vmatprep.subr.mxu0 0.0
  %216 = vmatpush1.msra.mxu0 0.0
  %217 = vmatprep.subr.mxu0 0.0
  %218 = vmatpush1.msra.mxu0 0.0
  %219 = vmatprep.subr.mxu0 0.0
  %220 = vmatpush1.msra.mxu0 0.0
  %221 = vmatprep.subr.mxu0 0.0
  %222 = vmatpush1.msra.mxu0 0.0
  %223 = vmatprep.subr.mxu0 0.0
  %224 = vmatpush1.msra.mxu0 0.0
  %225 = vmatprep.mubr.f32.mxu0 0.0
  %226 = vmatmul.mubr.f32.gmra.mrb[0].mxu0 %v147
  %v227 = vpop.f32.mrb[0].mxu0
  %v228 = vadd.f32 %v127, %v227
  %v229 = vpop.f32.mrb[0].mxu0
  %230 = vmatprep.mubr.f32.mxu0 0.0
  %231 = vmatmul.mubr.f32.gmra.mrb[0].mxu0 %v150
  %v232 = vpop.f32.mrb[0].mxu0
  %v233 = vadd.f32 %v132, %v232
  %v234 = vpop.f32.mrb[0].mxu0
  %235 = vmatprep.mubr.f32.mxu0 0.0
  %236 = vmatmul.mubr.f32.gmra.mrb[0].mxu0 %v153
  %v237 = vpop.f32.mrb[0].mxu0
  %v238 = vadd.f32 %v137, %v237
  %v239 = vpop.f32.mrb[0].mxu0
  %240 = vmatprep.mubr.f32.mxu0 0.0
  %241 = vmatmul.mubr.f32.gmra.mrb[0].mxu0 %v156
  %v242 = vpop.f32.mrb[0].mxu0
  %v243 = vadd.f32 %v142, %v242
  %v244 = vpop.f32.mrb[0].mxu0
  %245 = vdwg.mxu0
  %v246 = vld [vmem:[%s4] sm:$0xff]
  %v247 = vld [vmem:[%s4 + $0x8] sm:$0xff]
  %v248 = vld [vmem:[%s4 + $0x10] sm:$0xff]
  %v249 = vld [vmem:[%s4 + $0x18] sm:$0xff]
  %251 = vset.pattern.permute.xlu0 0
  %252 = vperm.xlu0 %251, %v246
  %v253 = vpop.permute.xlu0 %252
  %256 = vset.pattern.permute.xlu0 0
  %257 = vperm.xlu0 %256, %v247
  %v258 = vpop.permute.xlu0 %257
  %261 = vset.pattern.permute.xlu0 0
  %262 = vperm.xlu0 %261, %v248
  %v263 = vpop.permute.xlu0 %262
  %266 = vset.pattern.permute.xlu0 0
  %267 = vperm.xlu0 %266, %v249
  %v268 = vpop.permute.xlu0 %267
  %v270 = vadd.f32 %v228, %v253
  %v271 = vadd.f32 %v233, %v258
  %v272 = vadd.f32 %v238, %v263
  %v273 = vadd.f32 %v243, %v268
  %v274 = vmax.f32 %v270, 0.0
  %v275 = vmax.f32 %v271, 0.0
  %v276 = vmax.f32 %v272, 0.0
  %v277 = vmax.f32 %v273, 0.0
  %v278 = vld [vmem:[%s5] sm:$0xff]
  %v279 = vld [vmem:[%s5 + $0x8] sm:$0xff]
  %v280 = vld [vmem:[%s5 + $0x10] sm:$0xff]
  %v281 = vld [vmem:[%s5 + $0x18] sm:$0xff]
  %v282 = vld [vmem:[%s6] sm:$0xff]
  %v283 = vld [vmem:[%s6 + $0x8] sm:$0xff]
  %v284 = vld [vmem:[%s6 + $0x10] sm:$0xff]
  %v285 = vld [vmem:[%s6 + $0x18] sm:$0xff]
  %287 = vset.pattern.permute.xlu0 0
  %288 = vperm.xlu0 %287, %v282
  %v289 = vpop.permute.xlu0 %288
  %292 = vset.pattern.permute.xlu0 0
  %293 = vperm.xlu0 %292, %v283
  %v294 = vpop.permute.xlu0 %293
  %297 = vset.pattern.permute.xlu0 0
  %298 = vperm.xlu0 %297, %v284
  %v299 = vpop.permute.xlu0 %298
  %302 = vset.pattern.permute.xlu0 0
  %303 = vperm.xlu0 %302, %v285
  %v304 = vpop.permute.xlu0 %303
  %vm306 = vcmask 261120
  %v308 = vsel %vm306, %v278, 0
  %v311 = vsel %vm306, %v279, 0
  %v314 = vsel %vm306, %v280, 0
  %v317 = vsel %vm306, %v281, 0
  %319 = vmatprep.subr.mxu0 0.0
  %320 = vmatpush1.msra.mxu0 %v274
  %321 = vmatprep.subr.mxu0 0.0
  %322 = vmatpush1.msra.mxu0 %v275
  %323 = vmatprep.subr.mxu0 0.0
  %324 = vmatpush1.msra.mxu0 %v276
  %325 = vmatprep.subr.mxu0 0.0
  %326 = vmatpush1.msra.mxu0 %v277
  %327 = vmatprep.subr.mxu0 0.0
  %328 = vmatpush1.msra.mxu0 0.0
  %329 = vmatprep.subr.mxu0 0.0
  %330 = vmatpush1.msra.mxu0 0.0
  %331 = vmatprep.subr.mxu0 0.0
  %332 = vmatpush1.msra.mxu0 0.0
  %333 = vmatprep.subr.mxu0 0.0
  %334 = vmatpush1.msra.mxu0 0.0
  %335 = vmatprep.subr.mxu0 0.0
  %336 = vmatpush1.msra.mxu0 0.0
  %337 = vmatprep.subr.mxu0 0.0
  %338 = vmatpush1.msra.mxu0 0.0
  %339 = vmatprep.subr.mxu0 0.0
  %340 = vmatpush1.msra.mxu0 0.0
  %341 = vmatprep.subr.mxu0 0.0
  %342 = vmatpush1.msra.mxu0 0.0
  %343 = vmatprep.subr.mxu0 0.0
  %344 = vmatpush1.msra.mxu0 0.0
  %345 = vmatprep.subr.mxu0 0.0
  %346 = vmatpush1.msra.mxu0 0.0
  %347 = vmatprep.subr.mxu0 0.0
  %348 = vmatpush1.msra.mxu0 0.0
  %349 = vmatprep.subr.mxu0 0.0
  %350 = vmatpush1.msra.mxu0 0.0
  %351 = vmatprep.subr.mxu0 0.0
  %352 = vmatpush1.msra.mxu0 0.0
  %353 = vmatprep.subr.mxu0 0.0
  %354 = vmatpush1.msra.mxu0 0.0
  %355 = vmatprep.subr.mxu0 0.0
  %356 = vmatpush1.msra.mxu0 0.0
  %357 = vmatprep.subr.mxu0 0.0
  %358 = vmatpush1.msra.mxu0 0.0
  %359 = vmatprep.subr.mxu0 0.0
  %360 = vmatpush1.msra.mxu0 0.0
  %361 = vmatprep.subr.mxu0 0.0
  %362 = vmatpush1.msra.mxu0 0.0
  %363 = vmatprep.subr.mxu0 0.0
  %364 = vmatpush1.msra.mxu0 0.0
  %365 = vmatprep.subr.mxu0 0.0
  %366 = vmatpush1.msra.mxu0 0.0
  %367 = vmatprep.subr.mxu0 0.0
  %368 = vmatpush1.msra.mxu0 0.0
  %369 = vmatprep.subr.mxu0 0.0
  %370 = vmatpush1.msra.mxu0 0.0
  %371 = vmatprep.subr.mxu0 0.0
  %372 = vmatpush1.msra.mxu0 0.0
  %373 = vmatprep.subr.mxu0 0.0
  %374 = vmatpush1.msra.mxu0 0.0
  %375 = vmatprep.subr.mxu0 0.0
  %376 = vmatpush1.msra.mxu0 0.0
  %377 = vmatprep.subr.mxu0 0.0
  %378 = vmatpush1.msra.mxu0 0.0
  %379 = vmatprep.subr.mxu0 0.0
  %380 = vmatpush1.msra.mxu0 0.0
  %381 = vmatprep.subr.mxu0 0.0
  %382 = vmatpush1.msra.mxu0 0.0
  %383 = vmatprep.mubr.f32.mxu0 0.0
  %384 = vmatmul.mubr.f32.gmra.mrb[0].mxu0 %v308
  %v385 = vpop.f32.mrb[0].mxu0
  %v386 = vadd.f32 %v289, %v385
  %v387 = vpop.f32.mrb[0].mxu0
  %388 = vmatprep.mubr.f32.mxu0 0.0
  %389 = vmatmul.mubr.f32.gmra.mrb[0].mxu0 %v311
  %v390 = vpop.f32.mrb[0].mxu0
  %v391 = vadd.f32 %v294, %v390
  %v392 = vpop.f32.mrb[0].mxu0
  %393 = vmatprep.mubr.f32.mxu0 0.0
  %394 = vmatmul.mubr.f32.gmra.mrb[0].mxu0 %v314
  %v395 = vpop.f32.mrb[0].mxu0
  %v396 = vadd.f32 %v299, %v395
  %v397 = vpop.f32.mrb[0].mxu0
  %398 = vmatprep.mubr.f32.mxu0 0.0
  %399 = vmatmul.mubr.f32.gmra.mrb[0].mxu0 %v317
  %v400 = vpop.f32.mrb[0].mxu0
  %v401 = vadd.f32 %v304, %v400
  %v402 = vpop.f32.mrb[0].mxu0
  %403 = vdwg.mxu0
  %v404 = vmax.f32 %v386, 0.0
  %v405 = vmax.f32 %v391, 0.0
  %v406 = vmax.f32 %v396, 0.0
  %v407 = vmax.f32 %v401, 0.0
  %v408 = vld [vmem:[%s7] sm:$0xff]
  %v409 = vld [vmem:[%s7 + $0x8] sm:$0xff]
  %v410 = vld [vmem:[%s8] sm:$0xff]
  %v411 = vld [vmem:[%s8 + $0x8] sm:$0xff]
  %413 = vset.pattern.permute.xlu0 0
  %414 = vperm.xlu0 %413, %v410
  %v415 = vpop.permute.xlu0 %414
  %418 = vset.pattern.permute.xlu0 0
  %419 = vperm.xlu0 %418, %v411
  %v420 = vpop.permute.xlu0 %419
  %v423 = vsel %vm306, %v408, 0
  %v426 = vsel %vm306, %v409, 0
  %428 = vmatprep.subr.mxu0 0.0
  %429 = vmatpush1.msra.mxu0 %v404
  %430 = vmatprep.subr.mxu0 0.0
  %431 = vmatpush1.msra.mxu0 %v405
  %432 = vmatprep.subr.mxu0 0.0
  %433 = vmatpush1.msra.mxu0 %v406
  %434 = vmatprep.subr.mxu0 0.0
  %435 = vmatpush1.msra.mxu0 %v407
  %436 = vmatprep.subr.mxu0 0.0
  %437 = vmatpush1.msra.mxu0 0.0
  %438 = vmatprep.subr.mxu0 0.0
  %439 = vmatpush1.msra.mxu0 0.0
  %440 = vmatprep.subr.mxu0 0.0
  %441 = vmatpush1.msra.mxu0 0.0
  %442 = vmatprep.subr.mxu0 0.0
  %443 = vmatpush1.msra.mxu0 0.0
  %444 = vmatprep.subr.mxu0 0.0
  %445 = vmatpush1.msra.mxu0 0.0
  %446 = vmatprep.subr.mxu0 0.0
  %447 = vmatpush1.msra.mxu0 0.0
  %448 = vmatprep.subr.mxu0 0.0
  %449 = vmatpush1.msra.mxu0 0.0
  %450 = vmatprep.subr.mxu0 0.0
  %451 = vmatpush1.msra.mxu0 0.0
  %452 = vmatprep.subr.mxu0 0.0
  %453 = vmatpush1.msra.mxu0 0.0
  %454 = vmatprep.subr.mxu0 0.0
  %455 = vmatpush1.msra.mxu0 0.0
  %456 = vmatprep.subr.mxu0 0.0
  %457 = vmatpush1.msra.mxu0 0.0
  %458 = vmatprep.subr.mxu0 0.0
  %459 = vmatpush1.msra.mxu0 0.0
  %460 = vmatprep.subr.mxu0 0.0
  %461 = vmatpush1.msra.mxu0 0.0
  %462 = vmatprep.subr.mxu0 0.0
  %463 = vmatpush1.msra.mxu0 0.0
  %464 = vmatprep.subr.mxu0 0.0
  %465 = vmatpush1.msra.mxu0 0.0
  %466 = vmatprep.subr.mxu0 0.0
  %467 = vmatpush1.msra.mxu0 0.0
  %468 = vmatprep.subr.mxu0 0.0
  %469 = vmatpush1.msra.mxu0 0.0
  %470 = vmatprep.subr.mxu0 0.0
  %471 = vmatpush1.msra.mxu0 0.0
  %472 = vmatprep.subr.mxu0 0.0
  %473 = vmatpush1.msra.mxu0 0.0
  %474 = vmatprep.subr.mxu0 0.0
  %475 = vmatpush1.msra.mxu0 0.0
  %476 = vmatprep.subr.mxu0 0.0
  %477 = vmatpush1.msra.mxu0 0.0
  %478 = vmatprep.subr.mxu0 0.0
  %479 = vmatpush1.msra.mxu0 0.0
  %480 = vmatprep.subr.mxu0 0.0
  %481 = vmatpush1.msra.mxu0 0.0
  %482 = vmatprep.subr.mxu0 0.0
  %483 = vmatpush1.msra.mxu0 0.0
  %484 = vmatprep.subr.mxu0 0.0
  %485 = vmatpush1.msra.mxu0 0.0
  %486 = vmatprep.subr.mxu0 0.0
  %487 = vmatpush1.msra.mxu0 0.0
  %488 = vmatprep.subr.mxu0 0.0
  %489 = vmatpush1.msra.mxu0 0.0
  %490 = vmatprep.subr.mxu0 0.0
  %491 = vmatpush1.msra.mxu0 0.0
  %492 = vmatprep.mubr.f32.mxu0 0.0
  %493 = vmatmul.mubr.f32.gmra.mrb[0].mxu0 %v423
  %v494 = vpop.f32.mrb[0].mxu0
  %v495 = vadd.f32 %v415, %v494
  %v496 = vpop.f32.mrb[0].mxu0
  %497 = vmatprep.mubr.f32.mxu0 0.0
  %498 = vmatmul.mubr.f32.gmra.mrb[0].mxu0 %v426
  %v499 = vpop.f32.mrb[0].mxu0
  %v500 = vadd.f32 %v420, %v499
  %v501 = vpop.f32.mrb[0].mxu0
  %502 = vdwg.mxu0
  %v503 = vmul.f32 %v495, %v495
  %v504 = vmul.f32 %v500, %v500
  %vm505 = vcmask 64512
  %v506 = vsel %vm505, %v503, 0.0
  %v507 = vsel %vm505, %v504, 0.0
  %v508 = vadd.f32 %v506, %v507
  %v509 = vrot.slane %v508, 4
  %v510 = vadd.f32 %v508, %v509
  %v511 = vrot.slane %v510, 2
  %v512 = vadd.f32 %v510, %v511
  %v513 = vrot.slane %v512, 1
  %v514 = vadd.f32 %v512, %v513
  %v515 = vmax.f32 %v514, 1e-24
  %v516 = vrsqrt.pop %v515
  %v517 = vmul.f32 %v516, 4.0
  %v518 = vmul.f32 %v495, %v517
  %v519 = vmul.f32 %v500, %v517
  %520 = vst.msk [vmem:[%s9] sm:$0xff] %vm505, %v518
  %521 = vst.msk [vmem:[%s9 + $0x8] sm:$0xff] %vm505, %v519
  // Predicated region
  $region38: #{tpu_custom_call.1} parent=0 // pred_check
    _
  $region39: #{tpu_custom_call.1} parent=0 // pred_check_branch
    %523 = sbr.rel (0) target = $region41
  $region40: #{tpu_custom_call.1} parent=0 // pred_region
    _
  $region41: #{tpu_custom_call.1} parent=0 // pred_fallthru
    _
  // Predicated region
  $region42: #{tpu_custom_call.1} parent=0 // pred_check
    _
  $region43: #{tpu_custom_call.1} parent=0 // pred_check_branch
    %525 = sbr.rel (0) target = $region45
  $region44: #{tpu_custom_call.1} parent=0 // pred_region
    _
  $region45: #{tpu_custom_call.1} parent=0 // pred_fallthru
    _

</llo_original>
